<compile_context>
chip_gen: v7x
topology: tpu7x:2x2x1
jax: 0.10.0
libtpu: 0.0.40
codegen_flags: <defaults>
</compile_context>

<pallas_src>
import functools

import numpy as np
import jax
import jax.numpy as jnp
from jax.experimental import pallas as pl
from jax.experimental.pallas import tpu as pltpu

SAMPLERATE = 22050.0   # zounds.SR22050()
WINDOW = 512
STEP = 256
N_BANDS = 128          # mel bands (scale.n_bands)
F_MIN = 20.0


def _round_up(x, m):
    return ((x + m - 1) // m) * m


def _mel_basis_fused(window=WINDOW, n_bands=N_BANDS, sr=SAMPLERATE, fmin=F_MIN):
    """Deterministic mel-spaced complex sinusoid basis, Hann window folded in.

    Returns (window, 2*n_bands): [:, :n_bands] = real part, [:, n_bands:] = imag part.
    """
    nyquist = sr / 2.0

    def hz_to_mel(f):
        return 2595.0 * np.log10(1.0 + f / 700.0)

    def mel_to_hz(m):
        return 700.0 * (10.0 ** (m / 2595.0) - 1.0)

    mels = np.linspace(hz_to_mel(fmin), hz_to_mel(nyquist), n_bands)
    freqs = mel_to_hz(mels)                                          # (n_bands,)
    n = np.arange(window, dtype=np.float64)[:, None]                 # (window, 1)
    hann = (0.5 - 0.5 * np.cos(2.0 * np.pi * np.arange(window) / window))[:, None]
    phase = 2.0 * np.pi * freqs[None, :] * n / sr                    # (window, n_bands)
    b_re = hann * np.cos(phase)
    b_im = hann * -np.sin(phase)
    fused = np.concatenate([b_re, b_im], axis=1).astype(np.float32)  # (window, 2*n_bands)
    return fused


def _melspec_kernel(chunks_ref, basis_ref, out_ref, frames_ref, *,
                    n_frames, tile_t, step):
    """One (batch, time-tile) grid step.

    chunks_ref: (1, n_frames, step) f32   -- full per-batch chunk slab (resident over j)
    basis_ref : (window, 2*n_bands) bf16  -- fused re/im basis (resident)
    out_ref   : (1, n_bands, out_cols) f32 -- TRANSPOSED spectrogram tile (time = lanes)
    frames_ref: (t_rows, window) bf16 VMEM scratch -- overlapping frames for this batch
    """
    j = pl.program_id(1)
    window = frames_ref.shape[1]
    t_rows = frames_ref.shape[0]

    # Build all overlapping frames for this batch element once (j == 0); the chunk
    # slab only re-DMAs when the batch index changes, so this amortizes over all j.
    @pl.when(j == 0)
    def _init():
        c = chunks_ref[0]                                          # (n_frames, step) f32
        # First half of every frame (cast once to bf16: matmul LHS dtype).
        frames_ref[:n_frames, :step] = c.astype(jnp.bfloat16)
        # Second half of frame t = chunk t+1.
        if n_frames > 1:
            frames_ref[:n_frames - 1, step:] = c[1:, :].astype(jnp.bfloat16)
        # Last frame's second half is the zero-padded audio tail.
        frames_ref[n_frames - 1:n_frames, step:] = jnp.zeros(
            (1, window - step), jnp.bfloat16)
        # Zero only the padded rows past the valid frames (their output columns are
        # clipped / sliced away, but keep them deterministic & finite).
        if t_rows > n_frames:
            frames_ref[n_frames:, :] = jnp.zeros(
                (t_rows - n_frames, window), jnp.bfloat16)

    t0 = pl.multiple_of(j * tile_t, 128)                           # tile_t % 128 == 0
    f = frames_ref[pl.ds(t0, tile_t), :]                           # (tile_t, window) bf16

    # Single fused MXU matmul: bf16 x bf16 -> f32 accumulate, 256 output lanes.
    proj = jnp.dot(f, basis_ref[...], preferred_element_type=jnp.float32)
    nb = basis_ref.shape[1] // 2
    re = proj[:, :nb]                 # lane-aligned slice at 0
    im = proj[:, nb:]                 # lane-aligned slice at 128
    mag = jnp.sqrt(re * re + im * im)                              # (tile_t, nb) f32, EUP sqrt

    # Fold the permute(0, 2, 1) into the kernel: XLU transpose, lane-dense store.
    mag_t = jnp.transpose(mag)                                     # (nb, tile_t) f32
    out_cols = out_ref.shape[2]                                    # tile_t, or T when T < tile_t
    out_ref[0] = mag_t[:, :out_cols].astype(out_ref.dtype)


def _melspec_pallas(chunks, basis_bf16):
    """(B, T, STEP) f32 chunks, (WINDOW, 2*N_BANDS) bf16 basis -> (B, N_BANDS, T) f32."""
    B, T, step = chunks.shape
    window, two_nb = basis_bf16.shape
    nb = two_nb // 2

    # Time tiling: the time axis is the LANE dim of the transposed output, so keep the
    # compute tile a multiple of 128; pick the candidate minimising ragged padding.
    t128 = _round_up(T, 128)
    if t128 <= 512:
        tile_t = t128
    else:
        tile_t = min((512, 384, 256, 128), key=lambda c: (_round_up(T, c), -c))
    grid_j = pl.cdiv(T, tile_t)
    t_rows = grid_j * tile_t          # frame-scratch rows (>= T, multiple of 128)
    out_cols = min(tile_t, T)         # out block width; ragged last block is clipped
    grid = (B, grid_j)

    kernel = functools.partial(_melspec_kernel, n_frames=T, tile_t=tile_t, step=step)

    flops = 2 * B * t_rows * window * two_nb
    bytes_accessed = (B * T * step * 4) + (window * two_nb * 2) + (B * nb * T * 4)

    # Residency is O(T) (chunk slab + frame scratch): raise the scoped VMEM limit when
    # needed.  TODO(synk): for very large n_samples (T >~ 16k) this exceeds v7x's
    # 64 MiB physical VMEM; a halo-tiled / scratch-free variant would be required.
    vmem_est = (2 * T * step * 4            # double-buffered f32 chunk slab
                + t_rows * window * 2       # bf16 frame scratch
                + 2 * window * two_nb * 2   # resident basis (double-buffered)
                + 2 * nb * tile_t * 4)      # output tile (double-buffered)
    vmem_limit = None
    if vmem_est > 14 * (2 ** 20):
        vmem_limit = int(min(vmem_est * 5 // 4 + (2 << 20), 112 * (2 ** 20)))

    return pl.pallas_call(
        kernel,
        out_shape=jax.ShapeDtypeStruct((B, nb, T), jnp.float32),
        grid_spec=pltpu.PrefetchScalarGridSpec(
            num_scalar_prefetch=0,
            grid=grid,
            in_specs=[
                # Full per-batch chunk slab; index map ignores j -> DMA once per batch.
                pl.BlockSpec((1, T, step), lambda b, j: (b, 0, 0)),
                # Fused basis, resident for the whole grid.
                pl.BlockSpec((window, two_nb), lambda b, j: (0, 0)),
            ],
            # Transposed output: (band, time) with time as lanes; ragged T clipped.
            out_specs=pl.BlockSpec((1, nb, out_cols), lambda b, j: (b, 0, j)),
            scratch_shapes=[pltpu.VMEM((t_rows, window), jnp.bfloat16)],
        ),
        compiler_params=pltpu.CompilerParams(
            dimension_semantics=("parallel", "arbitrary"),
            vmem_limit_bytes=vmem_limit),
        cost_estimate=pl.CostEstimate(
            flops=flops,
            transcendentals=B * t_rows * nb,
            bytes_accessed=bytes_accessed),
    )(chunks, basis_bf16)


class TimeFreqRepr:
    """JAX/Pallas port of the PyTorch TimeFreqRepr module (forward pass only)."""

    def __init__(self, n_samples):
        self.n_samples = n_samples
        self.window = WINDOW
        self.step = STEP
        self.n_bands = N_BANDS
        # MelScale.n_time_steps(n_samples)
        self.time_steps = n_samples // self.step
        basis_f32 = _mel_basis_fused()
        self.basis_f32 = jnp.asarray(basis_f32)                       # for reference checks
        self.basis = jnp.asarray(basis_f32, dtype=jnp.bfloat16)       # MXU operand
        self._forward = jax.jit(self._forward_impl)

    def _forward_impl(self, x):
        # x.view(-1, n_samples)
        x = x.reshape(-1, self.n_samples).astype(jnp.float32)
        B = x.shape[0]
        T = self.time_steps

        # Free row-major reshape into hop-sized chunks; the 50%-overlap frames are
        # assembled inside the kernel (no duplicated frame array in HBM).
        # TODO(synk): drops up to STEP-1 trailing samples when n_samples % STEP != 0;
        # verify against zounds MelScale padding behaviour.
        chunks = x[:, :T * self.step].reshape(B, T, self.step)

        # Kernel output is already (B, n_bands, T): the permute(0, 2, 1) is folded in.
        spec = _melspec_pallas(chunks, self.basis)
        return spec.reshape(B, self.n_bands, -1)

    def __call__(self, x):
        return self._forward(x)


def _reference(x, basis_f32, n_samples):
    """Pure-JAX f32 reference of the same forward pass (for sanity checking)."""
    T = n_samples // STEP
    x = x.reshape(-1, n_samples).astype(jnp.float32)
    B = x.shape[0]
    padded = jnp.pad(x, ((0, 0), (0, STEP)))
    ch = padded.reshape(B, T + 1, STEP)
    frames = jnp.concatenate([ch[:, :-1], ch[:, 1:]], axis=-1)        # (B, T, WINDOW)
    proj = jnp.einsum('btw,wk->btk', frames, basis_f32)
    nb = basis_f32.shape[1] // 2
    mag = jnp.sqrt(proj[..., :nb] ** 2 + proj[..., nb:] ** 2)
    return jnp.transpose(mag, (0, 2, 1))


if __name__ == "__main__":
    batch = 2
    key = jax.random.PRNGKey(0)

    # Two small configs: a tiny one and the module's default n_samples = 2**14.
    for n_samples in (2048, 2 ** 14):
        x = jax.random.normal(jax.random.fold_in(key, n_samples),
                              (batch, n_samples), dtype=jnp.float32)

        model = TimeFreqRepr(n_samples)
        out = jax.block_until_ready(model(x))

        assert out.shape == (batch, model.n_bands, model.time_steps), out.shape
        assert out.dtype == jnp.float32
        assert bool(jnp.all(jnp.isfinite(out)))

        # Loose tolerance: kernel uses bf16 MXU inputs with f32 accumulation.
        ref = jax.block_until_ready(_reference(x, model.basis_f32, n_samples))
        assert bool(jnp.allclose(out, ref, rtol=5e-2, atol=5e-1)), \
            float(jnp.max(jnp.abs(out - ref)))

    print("KERNEL_OK")
</pallas_src>

<mosaic_0001>
module attributes {stable_mosaic.version = 11 : i64} {
  func.func @_melspec_kernel(%arg0: i32, %arg1: i32, %arg2: memref<1x8x256xf32, #tpu.memory_space<vmem>>, %arg3: memref<512x256xbf16, #tpu.memory_space<vmem>>, %arg4: memref<1x128x8xf32, #tpu.memory_space<vmem>>, %arg5: memref<128x512xbf16, #tpu.memory_space<vmem>>) attributes {dimension_semantics = [#tpu.dimension_semantics<parallel>, #tpu.dimension_semantics<arbitrary>], iteration_bounds = array<i64: 2, 1>, scalar_prefetch = 0 : i64, scratch_operands = 1 : i64, tpu.core_type = #tpu.core_type<tc>, window_params = [{transform_indices = @transform_0, window_bounds = array<i64: 1, 8, 256>}, {pipeline_mode = #tpu.pipeline_mode<synchronous>, transform_indices = @transform_1, window_bounds = array<i64: 512, 256>}, {transform_indices = @transform_2, window_bounds = array<i64: 1, 128, 8>}]} {
    %c0_i32 = arith.constant 0 : i32
    %0 = arith.cmpi eq, %arg1, %c0_i32 : i32
    %1 = arith.extui %0 : i1 to i32
    %c0_i32_0 = arith.constant 0 : i32
    %2 = arith.cmpi ne, %1, %c0_i32_0 : i32
    scf.if %2 {
      %c0_6 = arith.constant 0 : index
      %c0_7 = arith.constant 0 : index
      %c0_8 = arith.constant 0 : index
      %20 = vector.load %arg2[%c0_6, %c0_7, %c0_8] : memref<1x8x256xf32, #tpu.memory_space<vmem>>, vector<1x8x256xf32>
      %21 = vector.shape_cast %20 : vector<1x8x256xf32> to vector<8x256xf32>
      %22 = arith.truncf %21 : vector<8x256xf32> to vector<8x256xbf16>
      %c0_9 = arith.constant 0 : index
      %c0_10 = arith.constant 0 : index
      %23 = vector.load %arg5[%c0_9, %c0_10] : memref<128x512xbf16, #tpu.memory_space<vmem>>, vector<8x256xbf16>
      tpu.vector_store %arg5[%c0_9, %c0_10], %22 {strides = array<i32>} : memref<128x512xbf16, #tpu.memory_space<vmem>>, vector<8x256xbf16>,
      %24 = vector.extract_strided_slice %21 {offsets = [1, 0], sizes = [7, 256], strides = [1, 1]} : vector<8x256xf32> to vector<7x256xf32>
      %25 = arith.truncf %24 : vector<7x256xf32> to vector<7x256xbf16>
      %c0_11 = arith.constant 0 : index
      %c256 = arith.constant 256 : index
      %26 = vector.load %arg5[%c0_11, %c256] : memref<128x512xbf16, #tpu.memory_space<vmem>>, vector<7x256xbf16>
      tpu.vector_store %arg5[%c0_11, %c256], %25 {strides = array<i32>} : memref<128x512xbf16, #tpu.memory_space<vmem>>, vector<7x256xbf16>,
      %cst_12 = arith.constant 0.000000e+00 : bf16
      %27 = vector.broadcast %cst_12 : bf16 to vector<1x256xbf16>
      %c7 = arith.constant 7 : index
      %c256_13 = arith.constant 256 : index
      %28 = vector.load %arg5[%c7, %c256_13] : memref<128x512xbf16, #tpu.memory_space<vmem>>, vector<1x256xbf16>
      tpu.vector_store %arg5[%c7, %c256_13], %27 {strides = array<i32>} : memref<128x512xbf16, #tpu.memory_space<vmem>>, vector<1x256xbf16>,
      %cst_14 = arith.constant 0.000000e+00 : bf16
      %29 = vector.broadcast %cst_14 : bf16 to vector<120x512xbf16>
      %c8 = arith.constant 8 : index
      %c0_15 = arith.constant 0 : index
      %30 = vector.load %arg5[%c8, %c0_15] : memref<128x512xbf16, #tpu.memory_space<vmem>>, vector<120x512xbf16>
      tpu.vector_store %arg5[%c8, %c0_15], %29 {strides = array<i32>} : memref<128x512xbf16, #tpu.memory_space<vmem>>, vector<120x512xbf16>,
    } else {
    }
    %c128_i32 = arith.constant 128 : i32
    %3 = arith.muli %arg1, %c128_i32 : i32
    %4 = tpu.assume_multiple %3, 128 : i32
    %5 = arith.index_cast %4 : i32 to index
    %c0 = arith.constant 0 : index
    %6 = vector.load %arg5[%5, %c0] : memref<128x512xbf16, #tpu.memory_space<vmem>>, vector<128x512xbf16>
    %c0_1 = arith.constant 0 : index
    %c0_2 = arith.constant 0 : index
    %7 = vector.load %arg3[%c0_1, %c0_2] : memref<512x256xbf16, #tpu.memory_space<vmem>>, vector<512x256xbf16>
    %cst = arith.constant dense<0.000000e+00> : vector<128x256xf32>
    %8 = tpu.matmul %6, %7, %cst {dimension_numbers = #tpu.dot_dimension_numbers<[1], [0], [0], [1], [0, 0, 1, 1], [], []>} : vector<128x512xbf16>, vector<512x256xbf16>, vector<128x256xf32> -> vector<128x256xf32>
    %9 = vector.extract_strided_slice %8 {offsets = [0, 0], sizes = [128, 128], strides = [1, 1]} : vector<128x256xf32> to vector<128x128xf32>
    %10 = vector.extract_strided_slice %8 {offsets = [0, 128], sizes = [128, 128], strides = [1, 1]} : vector<128x256xf32> to vector<128x128xf32>
    %11 = arith.mulf %9, %9 : vector<128x128xf32>
    %12 = arith.mulf %10, %10 : vector<128x128xf32>
    %13 = arith.addf %11, %12 : vector<128x128xf32>
    %14 = math.sqrt %13 : vector<128x128xf32>
    %15 = tpu.transpose %14, [1, 0] : vector<128x128xf32> -> vector<128x128xf32>
    %16 = vector.extract_strided_slice %15 {offsets = [0, 0], sizes = [128, 8], strides = [1, 1]} : vector<128x128xf32> to vector<128x8xf32>
    %c0_3 = arith.constant 0 : index
    %c0_4 = arith.constant 0 : index
    %c0_5 = arith.constant 0 : index
    %17 = vector.load %arg4[%c0_3, %c0_4, %c0_5] : memref<1x128x8xf32, #tpu.memory_space<vmem>>, vector<1x128x8xf32>
    %18 = vector.shape_cast %17 : vector<1x128x8xf32> to vector<128x8xf32>
    %19 = vector.shape_cast %16 : vector<128x8xf32> to vector<1x128x8xf32>
    tpu.vector_store %arg4[%c0_3, %c0_4, %c0_5], %19 {strides = array<i32>} : memref<1x128x8xf32, #tpu.memory_space<vmem>>, vector<1x128x8xf32>,
    return
  }
  func.func @transform_0(%arg0: i32, %arg1: i32) -> (i32, i32, i32) {
    %c0_i32 = arith.constant 0 : i32
    %c0_i32_0 = arith.constant 0 : i32
    %c0_i32_1 = arith.constant 0 : i32
    return %arg0, %c0_i32, %c0_i32_0 : i32, i32, i32
  }
  func.func @transform_1(%arg0: i32, %arg1: i32) -> (i32, i32) {
    %c0_i32 = arith.constant 0 : i32
    %c0_i32_0 = arith.constant 0 : i32
    %c0_i32_1 = arith.constant 0 : i32
    return %c0_i32, %c0_i32_0 : i32, i32
  }
  func.func @transform_2(%arg0: i32, %arg1: i32) -> (i32, i32, i32) {
    %c0_i32 = arith.constant 0 : i32
    %c0_i32_0 = arith.constant 0 : i32
    return %arg0, %c0_i32, %arg1 : i32, i32, i32
  }
}

</mosaic_0001>

<llo_original>
// kernel: _forward_impl.1
$region0: #{_forward_impl.1}
  #allocation0 [shape = 'u32[]', space=smem, size = 0x4, offset = 0x4, fixed_abs, tag = 'smem constant byte address 0x4 - core index']
  #allocation1 [shape = 'u32[144,128]{1,0:T(1,128)}', space=vmem, size = 0x12000, scoped, tag = 'internal scratch']
  #allocation2 [shape = 'bf16[128,512]{1,0:T(16,128)(2,1)}', space=vmem, size = 0x20000, scoped, tag = 'scratch operand']
  %s0 = inlined_call_operand.vmem [shape: f32[2,8,256], index: 0, kind: input, shape index: {}]
  %s1 = inlined_call_operand.vmem [shape: bf16[512,256], index: 1, kind: input, shape index: {}]
  %s2 = inlined_call_operand.vmem [shape: f32[2,128,8], index: 2, kind: output, shape index: {}]
  %s3 = sld [smem:[#allocation0]]
  $region45: #{_forward_impl.1} parent=0
    _
  %s5 = ssub.s32 1, %s3
  %s6 = scalar_select 0, %s5, %s3
  loop: start=0, step=1, limit=4
  $region2: #{_forward_impl.1} parent=0 // loop_pre_header
    _
  $region3: #{_forward_impl.1} parent=0 // loop_header
    %s8 = sphi 0, %s12
    %p9 = scmp.ge.s32.totalorder %s8, 4
    %s15 = sphi 0, %s27
    %s16 = sphi 0, %s23
    %s17 = sphi 0, %s15
    %s18 = sphi 0, %s16
    %s19 = sphi 0, %s17
    %s20 = sphi 0, %s18
    %s30 = sphi 0, %s32
    %s33 = sphi 0, %s30
    %s34 = sphi 0, %s33
    %s50 = sphi 0, %s34
    %s54 = sphi 0, %s54
    %s56 = sphi 0, %s54
    %s57 = sphi 0, %s56
    %s71 = sphi 0, %s57
    %s79 = sphi 0, %s81
    %s82 = sphi 0, %s79
    %s83 = sphi 0, %s82
    %s99 = sphi 0, %s83
  $region4: #{_forward_impl.1} parent=0 // loop_header_branch
    %11 = sbr.rel (%p9) target = $region8
  $region5: #{_forward_impl.1} parent=0 // loop_body
    %s13 = ssub.s32 %s8, 1
    %s14 = ssub.s32 %s8, 2
    %s21 = sadd.s32 1, %s16
    %p22 = scmp.ge.s32.totalorder %s21, 1
    %s23 = scalar_select %p22, 0, %s21
    %s24 = sadd.s32 1, %s15
    %s25 = scalar_select %p22, %s24, %s15
    %p26 = scmp.ge.s32.totalorder %s25, 2
    %s27 = scalar_select %p26, 0, %s25
    %s28 = ssub.s32 %s15, %s27
    %p29 = scmp.eq.s32.totalorder %s28, 0
    %s31 = sadd.s32 %s30, 1
    %s32 = scalar_select %p29, %s30, %s31
    %p35 = pneg %p29
    %p36 = scmp.eq.s32.totalorder %s8, 1
    %p37 = por %p35, %p36
    %p38 = scmp.ne.s32.totalorder %s30, %s33
    %p39 = scmp.eq.s32.totalorder %s8, 0
    %p40 = por %p38, %p39
    %p41 = scmp.ne.s32.totalorder %s30, %s33
    %p42 = scmp.eq.s32.totalorder %s13, 1
    %p43 = por %p41, %p42
    %p44 = scmp.ne.s32.totalorder %s33, %s34
    %p45 = scmp.eq.s32.totalorder %s13, 0
    %p46 = por %p44, %p45
    %p47 = scmp.ne.s32.totalorder %s33, %s34
    %p48 = scmp.eq.s32.totalorder %s14, 1
    %p49 = por %p47, %p48
    %p51 = scmp.ne.s32.totalorder %s34, %s50
    %p52 = scmp.eq.s32.totalorder %s14, 0
    %p53 = por %p51, %p52
    %s55 = sadd.s32 %s54, 1
    %p58 = scmp.eq.s32.totalorder %s8, 1
    %p59 = scmp.ne.s32.totalorder %s54, %s56
    %p60 = scmp.eq.s32.totalorder %s8, 0
    %p61 = por %p59, %p60
    %p62 = scmp.ne.s32.totalorder %s54, %s56
    %p63 = scmp.eq.s32.totalorder %s13, 1
    %p64 = por %p62, %p63
    %p65 = scmp.ne.s32.totalorder %s56, %s57
    %p66 = scmp.eq.s32.totalorder %s13, 0
    %p67 = por %p65, %p66
    %p68 = scmp.ne.s32.totalorder %s56, %s57
    %p69 = scmp.eq.s32.totalorder %s14, 1
    %p70 = por %p68, %p69
    %p72 = scmp.ne.s32.totalorder %s57, %s71
    %p73 = scmp.eq.s32.totalorder %s14, 0
    %p74 = por %p72, %p73
    %s75 = ssub.s32 %s15, %s27
    %s76 = ssub.s32 %s16, %s23
    %s77 = sor.u32 %s75, %s76
    %p78 = scmp.eq.s32.totalorder %s77, 0
    %s80 = sadd.s32 %s79, 1
    %s81 = scalar_select %p78, %s79, %s80
    %p84 = pneg %p78
    %p85 = scmp.eq.s32.totalorder %s8, 1
    %p86 = por %p84, %p85
    %p87 = scmp.ne.s32.totalorder %s79, %s82
    %p88 = scmp.eq.s32.totalorder %s8, 0
    %p89 = por %p87, %p88
    %p90 = scmp.ne.s32.totalorder %s79, %s82
    %p91 = scmp.eq.s32.totalorder %s13, 1
    %p92 = por %p90, %p91
    %p93 = scmp.ne.s32.totalorder %s82, %s83
    %p94 = scmp.eq.s32.totalorder %s13, 0
    %p95 = por %p93, %p94
    %p96 = scmp.ne.s32.totalorder %s82, %s83
    %p97 = scmp.eq.s32.totalorder %s14, 1
    %p98 = por %p96, %p97
    %p100 = scmp.ne.s32.totalorder %s83, %s99
    %p101 = scmp.eq.s32.totalorder %s14, 0
    %p102 = por %p100, %p101
    %p103 = scmp.le.s32.totalorder 1, %s8
    %p104 = scmp.lt.s32.totalorder %s8, 3
    %p105 = pnand %p103, %p104
    %p106 = pneg %p105
    // Predicated region
    $region9: #{_forward_impl.1} parent=5 // pred_check
      _
    $region10: #{_forward_impl.1} parent=5 // pred_check_branch
      %108 = sbr.rel (%p105) target = $region12
    $region11: #{_forward_impl.1} parent=5 // pred_region
      %s109 = ssub.s32 %s8, 1
      // Predicated region
      $region13: #{_forward_impl.1} parent=11 // pred_check
        %p110 = pneg %p67
      $region14: #{_forward_impl.1} parent=11 // pred_check_branch
        %112 = sbr.rel (%p110) target = $region16
      $region15: #{_forward_impl.1} parent=11 // pred_region
        _
      $region16: #{_forward_impl.1} parent=11 // pred_fallthru
        _
    $region12: #{_forward_impl.1} parent=5 // pred_fallthru
      _
    %p113 = scmp.lt.s32.totalorder %s8, 2
    // Predicated region
    $region17: #{_forward_impl.1} parent=5 // pred_check
      %p114 = pneg %p113
    $region18: #{_forward_impl.1} parent=5 // pred_check_branch
      %116 = sbr.rel (%p114) target = $region20
    $region19: #{_forward_impl.1} parent=5 // pred_region
      // Predicated region
      $region21: #{_forward_impl.1} parent=19 // pred_check
        %p117 = pneg %p40
      $region22: #{_forward_impl.1} parent=19 // pred_check_branch
        %119 = sbr.rel (%p117) target = $region24
      $region23: #{_forward_impl.1} parent=19 // pred_region
        %p120 = scmp.lt.s32.totalorder %s15, 1
        %s121 = scalar_select %p120, %s15, 1
        %s122 = smul.addr %s121, 2
        %s123 = smul.addr %s122, 8
        %s124 = scalar_lea.vmem %s0, %s123
      $region24: #{_forward_impl.1} parent=19 // pred_fallthru
        _
    $region20: #{_forward_impl.1} parent=5 // pred_fallthru
      _
    %p125 = scmp.le.s32.totalorder 1, %s8
    %p126 = scmp.lt.s32.totalorder %s8, 3
    %p127 = pnand %p125, %p126
    %p128 = pneg %p127
    // Predicated region
    $region25: #{_forward_impl.1} parent=5 // pred_check
      _
    $region26: #{_forward_impl.1} parent=5 // pred_check_branch
      %130 = sbr.rel (%p127) target = $region28
    $region27: #{_forward_impl.1} parent=5 // pred_region
      %s131 = ssub.s32 %s8, 1
      %p132 = scmp.lt.s32.totalorder %s17, 1
      %s133 = scalar_select %p132, %s17, 1
      %s134 = smul.addr %s133, 2
      %s135 = smul.addr %s134, 8
      %s136 = scalar_lea.vmem %s0, %s135
      %p137 = pneg %p46
      %p138 = pneg %p43
      %p139 = pneg %p67
      %p140 = pneg %p64
      %p141 = pneg %p95
      %p142 = pneg %p92
      %p143 = scmp.lt.s32.totalorder %s17, 1
      %s144 = scalar_select %p143, %s17, 1
      %p145 = scmp.lt.s32.totalorder %s18, 0
      %s146 = scalar_select %p145, %s18, 0
      %s147 = smul.addr %s144, 16
      %s148 = sadd.s32 %s146, %s147
      %s149 = smul.addr %s148, 8
      %s150 = scalar_lea.vmem %s2, %s149
      %p151 = scmp.lt.s32.totalorder %s17, 1
      %s152 = scalar_select %p151, %s17, 1
      %s153 = smul.addr %s152, 2
      %s154 = smul.addr %s153, 8
      %s155 = scalar_lea.vmem %s0, %s154
      %p156 = scmp.lt.s32.totalorder %s17, 1
      %s157 = scalar_select %p156, %s17, 1
      %p158 = scmp.lt.s32.totalorder %s18, 0
      %s159 = scalar_select %p158, %s18, 0
      %s160 = smul.addr %s157, 16
      %s161 = sadd.s32 %s159, %s160
      %s162 = smul.addr %s161, 8
      %s163 = scalar_lea.vmem %s2, %s162
      %p165 = scmp.eq.s32.totalorder %s18, 0
      // Predicated region
      $region29: #{_forward_impl.1} parent=27 // pred_check
        %p166 = pneg %p165
      $region30: #{_forward_impl.1} parent=27 // pred_check_branch
        %168 = sbr.rel (%p166) target = $region32
      $region31: #{_forward_impl.1} parent=27 // pred_region
        %v169 = vld [vmem:[%s155] sm:$0xff]
        %v170 = vld [vmem:[%s155 + $0x8] sm:$0xff]
        %v171 = vpack.c.bf16 %v169, %v169
        %v172 = vpack.c.bf16 %v170, %v170
        %173 = vst [vmem:[#allocation2] sm:$0xf] %v171
        %174 = vst [vmem:[#allocation2 + $0x8] sm:$0xf] %v172
        %v176 = vshrl.u32 %v171, 16
        %v178 = vshll.u32 %v171, 16
        %v180 = vrot.slane %v178, 1
        %v181 = vor.u32 %v176, %v180
        %v183 = vshrl.u32 %v172, 16
        %v185 = vshll.u32 %v172, 16
        %v187 = vrot.slane %v185, 1
        %v188 = vor.u32 %v183, %v187
        %vm191 = vcmask 1043456
        %vm192 = vsmask.f32 3328
        %vm193 = vmand %vm191, %vm192
        %v194 = vld [vmem:[#allocation2 + $0x10] sm:$0xf]
        %v195 = vsel %vm193, %v181, %v194
        %196 = vst [vmem:[#allocation2 + $0x10] sm:$0xf] %v195
        %v197 = vld [vmem:[#allocation2 + $0x18] sm:$0xf]
        %v198 = vsel %vm193, %v188, %v197
        %199 = vst [vmem:[#allocation2 + $0x18] sm:$0xf] %v198
        %vm200 = vcmask 1043459
        %vm201 = vsmask.f32 7950
        %vm202 = vmand %vm200, %vm201
        %v203 = vld [vmem:[#allocation2 + $0x10] sm:$0x8]
        %v204 = vsel %vm202, 0, %v203
        %205 = vst [vmem:[#allocation2 + $0x10] sm:$0x8] %v204
        %v206 = vld [vmem:[#allocation2 + $0x18] sm:$0x8]
        %v207 = vsel %vm202, 0, %v206
        %208 = vst [vmem:[#allocation2 + $0x18] sm:$0x8] %v207
        %209 = vst [vmem:[#allocation2] sm:$0xf0] 0
        %210 = vst [vmem:[#allocation2 + $0x8] sm:$0xf0] 0
        %211 = vst [vmem:[#allocation2 + $0x10] sm:$0xf0] 0
        %212 = vst [vmem:[#allocation2 + $0x18] sm:$0xf0] 0
        %213 = vst [vmem:[#allocation2 + $0x20] sm:$0xff] 0
        %214 = vst [vmem:[#allocation2 + $0x28] sm:$0xff] 0
        %215 = vst [vmem:[#allocation2 + $0x30] sm:$0xff] 0
        %216 = vst [vmem:[#allocation2 + $0x38] sm:$0xff] 0
        %217 = vst [vmem:[#allocation2 + $0x40] sm:$0xff] 0
        %218 = vst [vmem:[#allocation2 + $0x48] sm:$0xff] 0
        %219 = vst [vmem:[#allocation2 + $0x50] sm:$0xff] 0
        %220 = vst [vmem:[#allocation2 + $0x58] sm:$0xff] 0
        %221 = vst [vmem:[#allocation2 + $0x60] sm:$0xff] 0
        %222 = vst [vmem:[#allocation2 + $0x68] sm:$0xff] 0
        %223 = vst [vmem:[#allocation2 + $0x70] sm:$0xff] 0
        %224 = vst [vmem:[#allocation2 + $0x78] sm:$0xff] 0
        %225 = vst [vmem:[#allocation2 + $0x80] sm:$0xff] 0
        %226 = vst [vmem:[#allocation2 + $0x88] sm:$0xff] 0
        %227 = vst [vmem:[#allocation2 + $0x90] sm:$0xff] 0
        %228 = vst [vmem:[#allocation2 + $0x98] sm:$0xff] 0
        %229 = vst [vmem:[#allocation2 + $0xa0] sm:$0xff] 0
        %230 = vst [vmem:[#allocation2 + $0xa8] sm:$0xff] 0
        %231 = vst [vmem:[#allocation2 + $0xb0] sm:$0xff] 0
        %232 = vst [vmem:[#allocation2 + $0xb8] sm:$0xff] 0
        %233 = vst [vmem:[#allocation2 + $0xc0] sm:$0xff] 0
        %234 = vst [vmem:[#allocation2 + $0xc8] sm:$0xff] 0
        %235 = vst [vmem:[#allocation2 + $0xd0] sm:$0xff] 0
        %236 = vst [vmem:[#allocation2 + $0xd8] sm:$0xff] 0
        %237 = vst [vmem:[#allocation2 + $0xe0] sm:$0xff] 0
        %238 = vst [vmem:[#allocation2 + $0xe8] sm:$0xff] 0
        %239 = vst [vmem:[#allocation2 + $0xf0] sm:$0xff] 0
        %240 = vst [vmem:[#allocation2 + $0xf8] sm:$0xff] 0
      $region32: #{_forward_impl.1} parent=27 // pred_fallthru
        _
      %s241 = smul.u32 %s18, 128
      %s242 = sshra.s32 %s241, 4
      %s243 = sand.u32 %s241, 15
      %s244 = smul.u32 %s242, 4
      %s245 = smul.addr %s244, 8
      %s246 = scalar_lea.vmem [#allocation2], %s245
      %v247 = vld [vmem:[%s246] sm:$0xff]
      %v248 = vld [vmem:[%s246 + $0x8] sm:$0xff]
      %v249 = vld [vmem:[%s246 + $0x10] sm:$0xff]
      %v250 = vld [vmem:[%s246 + $0x18] sm:$0xff]
      %v251 = vld [vmem:[%s246 + $0x20] sm:$0xff]
      %v252 = vld [vmem:[%s246 + $0x28] sm:$0xff]
      %v253 = vld [vmem:[%s246 + $0x30] sm:$0xff]
      %v254 = vld [vmem:[%s246 + $0x38] sm:$0xff]
      %v255 = vld [vmem:[%s246 + $0x40] sm:$0xff]
      %v256 = vld [vmem:[%s246 + $0x48] sm:$0xff]
      %v257 = vld [vmem:[%s246 + $0x50] sm:$0xff]
      %v258 = vld [vmem:[%s246 + $0x58] sm:$0xff]
      %v259 = vld [vmem:[%s246 + $0x60] sm:$0xff]
      %v260 = vld [vmem:[%s246 + $0x68] sm:$0xff]
      %v261 = vld [vmem:[%s246 + $0x70] sm:$0xff]
      %v262 = vld [vmem:[%s246 + $0x78] sm:$0xff]
      %v263 = vld [vmem:[%s246 + $0x80] sm:$0xff]
      %v264 = vld [vmem:[%s246 + $0x88] sm:$0xff]
      %v265 = vld [vmem:[%s246 + $0x90] sm:$0xff]
      %v266 = vld [vmem:[%s246 + $0x98] sm:$0xff]
      %v267 = vld [vmem:[%s246 + $0xa0] sm:$0xff]
      %v268 = vld [vmem:[%s246 + $0xa8] sm:$0xff]
      %v269 = vld [vmem:[%s246 + $0xb0] sm:$0xff]
      %v270 = vld [vmem:[%s246 + $0xb8] sm:$0xff]
      %v271 = vld [vmem:[%s246 + $0xc0] sm:$0xff]
      %v272 = vld [vmem:[%s246 + $0xc8] sm:$0xff]
      %v273 = vld [vmem:[%s246 + $0xd0] sm:$0xff]
      %v274 = vld [vmem:[%s246 + $0xd8] sm:$0xff]
      %v275 = vld [vmem:[%s246 + $0xe0] sm:$0xff]
      %v276 = vld [vmem:[%s246 + $0xe8] sm:$0xff]
      %v277 = vld [vmem:[%s246 + $0xf0] sm:$0xff]
      %v278 = vld [vmem:[%s246 + $0xf8] sm:$0xff]
      %v279 = vld [vmem:[%s1] sm:$0xff]
      %v280 = vld [vmem:[%s1 + $0x8] sm:$0xff]
      %v281 = vld [vmem:[%s1 + $0x10] sm:$0xff]
      %v282 = vld [vmem:[%s1 + $0x18] sm:$0xff]
      %v283 = vld [vmem:[%s1 + $0x20] sm:$0xff]
      %v284 = vld [vmem:[%s1 + $0x28] sm:$0xff]
      %v285 = vld [vmem:[%s1 + $0x30] sm:$0xff]
      %v286 = vld [vmem:[%s1 + $0x38] sm:$0xff]
      %v287 = vld [vmem:[%s1 + $0x40] sm:$0xff]
      %v288 = vld [vmem:[%s1 + $0x48] sm:$0xff]
      %v289 = vld [vmem:[%s1 + $0x50] sm:$0xff]
      %v290 = vld [vmem:[%s1 + $0x58] sm:$0xff]
      %v291 = vld [vmem:[%s1 + $0x60] sm:$0xff]
      %v292 = vld [vmem:[%s1 + $0x68] sm:$0xff]
      %v293 = vld [vmem:[%s1 + $0x70] sm:$0xff]
      %v294 = vld [vmem:[%s1 + $0x78] sm:$0xff]
      %v295 = vld [vmem:[%s1 + $0x80] sm:$0xff]
      %v296 = vld [vmem:[%s1 + $0x88] sm:$0xff]
      %v297 = vld [vmem:[%s1 + $0x90] sm:$0xff]
      %v298 = vld [vmem:[%s1 + $0x98] sm:$0xff]
      %v299 = vld [vmem:[%s1 + $0xa0] sm:$0xff]
      %v300 = vld [vmem:[%s1 + $0xa8] sm:$0xff]
      %v301 = vld [vmem:[%s1 + $0xb0] sm:$0xff]
      %v302 = vld [vmem:[%s1 + $0xb8] sm:$0xff]
      %v303 = vld [vmem:[%s1 + $0xc0] sm:$0xff]
      %v304 = vld [vmem:[%s1 + $0xc8] sm:$0xff]
      %v305 = vld [vmem:[%s1 + $0xd0] sm:$0xff]
      %v306 = vld [vmem:[%s1 + $0xd8] sm:$0xff]
      %v307 = vld [vmem:[%s1 + $0xe0] sm:$0xff]
      %v308 = vld [vmem:[%s1 + $0xe8] sm:$0xff]
      %v309 = vld [vmem:[%s1 + $0xf0] sm:$0xff]
      %v310 = vld [vmem:[%s1 + $0xf8] sm:$0xff]
      %v311 = vld [vmem:[%s1 + $0x100] sm:$0xff]
      %v312 = vld [vmem:[%s1 + $0x108] sm:$0xff]
      %v313 = vld [vmem:[%s1 + $0x110] sm:$0xff]
      %v314 = vld [vmem:[%s1 + $0x118] sm:$0xff]
      %v315 = vld [vmem:[%s1 + $0x120] sm:$0xff]
      %v316 = vld [vmem:[%s1 + $0x128] sm:$0xff]
      %v317 = vld [vmem:[%s1 + $0x130] sm:$0xff]
      %v318 = vld [vmem:[%s1 + $0x138] sm:$0xff]
      %v319 = vld [vmem:[%s1 + $0x140] sm:$0xff]
      %v320 = vld [vmem:[%s1 + $0x148] sm:$0xff]
      %v321 = vld [vmem:[%s1 + $0x150] sm:$0xff]
      %v322 = vld [vmem:[%s1 + $0x158] sm:$0xff]
      %v323 = vld [vmem:[%s1 + $0x160] sm:$0xff]
      %v324 = vld [vmem:[%s1 + $0x168] sm:$0xff]
      %v325 = vld [vmem:[%s1 + $0x170] sm:$0xff]
      %v326 = vld [vmem:[%s1 + $0x178] sm:$0xff]
      %v327 = vld [vmem:[%s1 + $0x180] sm:$0xff]
      %v328 = vld [vmem:[%s1 + $0x188] sm:$0xff]
      %v329 = vld [vmem:[%s1 + $0x190] sm:$0xff]
      %v330 = vld [vmem:[%s1 + $0x198] sm:$0xff]
      %v331 = vld [vmem:[%s1 + $0x1a0] sm:$0xff]
      %v332 = vld [vmem:[%s1 + $0x1a8] sm:$0xff]
      %v333 = vld [vmem:[%s1 + $0x1b0] sm:$0xff]
      %v334 = vld [vmem:[%s1 + $0x1b8] sm:$0xff]
      %v335 = vld [vmem:[%s1 + $0x1c0] sm:$0xff]
      %v336 = vld [vmem:[%s1 + $0x1c8] sm:$0xff]
      %v337 = vld [vmem:[%s1 + $0x1d0] sm:$0xff]
      %v338 = vld [vmem:[%s1 + $0x1d8] sm:$0xff]
      %v339 = vld [vmem:[%s1 + $0x1e0] sm:$0xff]
      %v340 = vld [vmem:[%s1 + $0x1e8] sm:$0xff]
      %v341 = vld [vmem:[%s1 + $0x1f0] sm:$0xff]
      %v342 = vld [vmem:[%s1 + $0x1f8] sm:$0xff]
      %v407 = vunpack.c.l.b16 %v279
      %v408 = vunpack.c.h.b16 %v279
      %v409 = vunpack.c.l.b16 %v280
      %v410 = vunpack.c.h.b16 %v280
      %v411 = vunpack.c.l.b16 %v281
      %v412 = vunpack.c.h.b16 %v281
      %v413 = vunpack.c.l.b16 %v282
      %v414 = vunpack.c.h.b16 %v282
      %v415 = vunpack.c.l.b16 %v283
      %v416 = vunpack.c.h.b16 %v283
      %v417 = vunpack.c.l.b16 %v284
      %v418 = vunpack.c.h.b16 %v284
      %v419 = vunpack.c.l.b16 %v285
      %v420 = vunpack.c.h.b16 %v285
      %v421 = vunpack.c.l.b16 %v286
      %v422 = vunpack.c.h.b16 %v286
      %v423 = vunpack.c.l.b16 %v287
      %v424 = vunpack.c.h.b16 %v287
      %v425 = vunpack.c.l.b16 %v288
      %v426 = vunpack.c.h.b16 %v288
      %v427 = vunpack.c.l.b16 %v289
      %v428 = vunpack.c.h.b16 %v289
      %v429 = vunpack.c.l.b16 %v290
      %v430 = vunpack.c.h.b16 %v290
      %v431 = vunpack.c.l.b16 %v291
      %v432 = vunpack.c.h.b16 %v291
      %v433 = vunpack.c.l.b16 %v292
      %v434 = vunpack.c.h.b16 %v292
      %v435 = vunpack.c.l.b16 %v293
      %v436 = vunpack.c.h.b16 %v293
      %v437 = vunpack.c.l.b16 %v294
      %v438 = vunpack.c.h.b16 %v294
      %v439 = vunpack.c.l.b16 %v295
      %v440 = vunpack.c.h.b16 %v295
      %v441 = vunpack.c.l.b16 %v296
      %v442 = vunpack.c.h.b16 %v296
      %v443 = vunpack.c.l.b16 %v297
      %v444 = vunpack.c.h.b16 %v297
      %v445 = vunpack.c.l.b16 %v298
      %v446 = vunpack.c.h.b16 %v298
      %v447 = vunpack.c.l.b16 %v299
      %v448 = vunpack.c.h.b16 %v299
      %v449 = vunpack.c.l.b16 %v300
      %v450 = vunpack.c.h.b16 %v300
      %v451 = vunpack.c.l.b16 %v301
      %v452 = vunpack.c.h.b16 %v301
      %v453 = vunpack.c.l.b16 %v302
      %v454 = vunpack.c.h.b16 %v302
      %v455 = vunpack.c.l.b16 %v303
      %v456 = vunpack.c.h.b16 %v303
      %v457 = vunpack.c.l.b16 %v304
      %v458 = vunpack.c.h.b16 %v304
      %v459 = vunpack.c.l.b16 %v305
      %v460 = vunpack.c.h.b16 %v305
      %v461 = vunpack.c.l.b16 %v306
      %v462 = vunpack.c.h.b16 %v306
      %v463 = vunpack.c.l.b16 %v307
      %v464 = vunpack.c.h.b16 %v307
      %v465 = vunpack.c.l.b16 %v308
      %v466 = vunpack.c.h.b16 %v308
      %v467 = vunpack.c.l.b16 %v309
      %v468 = vunpack.c.h.b16 %v309
      %v469 = vunpack.c.l.b16 %v310
      %v470 = vunpack.c.h.b16 %v310
      %v471 = vunpack.c.l.b16 %v311
      %v472 = vunpack.c.h.b16 %v311
      %v473 = vunpack.c.l.b16 %v312
      %v474 = vunpack.c.h.b16 %v312
      %v475 = vunpack.c.l.b16 %v313
      %v476 = vunpack.c.h.b16 %v313
      %v477 = vunpack.c.l.b16 %v314
      %v478 = vunpack.c.h.b16 %v314
      %v479 = vunpack.c.l.b16 %v315
      %v480 = vunpack.c.h.b16 %v315
      %v481 = vunpack.c.l.b16 %v316
      %v482 = vunpack.c.h.b16 %v316
      %v483 = vunpack.c.l.b16 %v317
      %v484 = vunpack.c.h.b16 %v317
      %v485 = vunpack.c.l.b16 %v318
      %v486 = vunpack.c.h.b16 %v318
      %v487 = vunpack.c.l.b16 %v319
      %v488 = vunpack.c.h.b16 %v319
      %v489 = vunpack.c.l.b16 %v320
      %v490 = vunpack.c.h.b16 %v320
      %v491 = vunpack.c.l.b16 %v321
      %v492 = vunpack.c.h.b16 %v321
      %v493 = vunpack.c.l.b16 %v322
      %v494 = vunpack.c.h.b16 %v322
      %v495 = vunpack.c.l.b16 %v323
      %v496 = vunpack.c.h.b16 %v323
      %v497 = vunpack.c.l.b16 %v324
      %v498 = vunpack.c.h.b16 %v324
      %v499 = vunpack.c.l.b16 %v325
      %v500 = vunpack.c.h.b16 %v325
      %v501 = vunpack.c.l.b16 %v326
      %v502 = vunpack.c.h.b16 %v326
      %v503 = vunpack.c.l.b16 %v327
      %v504 = vunpack.c.h.b16 %v327
      %v505 = vunpack.c.l.b16 %v328
      %v506 = vunpack.c.h.b16 %v328
      %v507 = vunpack.c.l.b16 %v329
      %v508 = vunpack.c.h.b16 %v329
      %v509 = vunpack.c.l.b16 %v330
      %v510 = vunpack.c.h.b16 %v330
      %v511 = vunpack.c.l.b16 %v331
      %v512 = vunpack.c.h.b16 %v331
      %v513 = vunpack.c.l.b16 %v332
      %v514 = vunpack.c.h.b16 %v332
      %v515 = vunpack.c.l.b16 %v333
      %v516 = vunpack.c.h.b16 %v333
      %v517 = vunpack.c.l.b16 %v334
      %v518 = vunpack.c.h.b16 %v334
      %v519 = vunpack.c.l.b16 %v335
      %v520 = vunpack.c.h.b16 %v335
      %v521 = vunpack.c.l.b16 %v336
      %v522 = vunpack.c.h.b16 %v336
      %v523 = vunpack.c.l.b16 %v337
      %v524 = vunpack.c.h.b16 %v337
      %v525 = vunpack.c.l.b16 %v338
      %v526 = vunpack.c.h.b16 %v338
      %v527 = vunpack.c.l.b16 %v339
      %v528 = vunpack.c.h.b16 %v339
      %v529 = vunpack.c.l.b16 %v340
      %v530 = vunpack.c.h.b16 %v340
      %v531 = vunpack.c.l.b16 %v341
      %v532 = vunpack.c.h.b16 %v341
      %v533 = vunpack.c.l.b16 %v342
      %v534 = vunpack.c.h.b16 %v342
      %v535 = vpack.c.b16 %v409, %v407
      %v536 = vpack.c.b16 %v410, %v408
      %v537 = vpack.c.b16 %v413, %v411
      %v538 = vpack.c.b16 %v414, %v412
      %v539 = vpack.c.b16 %v417, %v415
      %v540 = vpack.c.b16 %v418, %v416
      %v541 = vpack.c.b16 %v421, %v419
      %v542 = vpack.c.b16 %v422, %v420
      %v543 = vpack.c.b16 %v425, %v423
      %v544 = vpack.c.b16 %v426, %v424
      %v545 = vpack.c.b16 %v429, %v427
      %v546 = vpack.c.b16 %v430, %v428
      %v547 = vpack.c.b16 %v433, %v431
      %v548 = vpack.c.b16 %v434, %v432
      %v549 = vpack.c.b16 %v437, %v435
      %v550 = vpack.c.b16 %v438, %v436
      %v551 = vpack.c.b16 %v441, %v439
      %v552 = vpack.c.b16 %v442, %v440
      %v553 = vpack.c.b16 %v445, %v443
      %v554 = vpack.c.b16 %v446, %v444
      %v555 = vpack.c.b16 %v449, %v447
      %v556 = vpack.c.b16 %v450, %v448
      %v557 = vpack.c.b16 %v453, %v451
      %v558 = vpack.c.b16 %v454, %v452
      %v559 = vpack.c.b16 %v457, %v455
      %v560 = vpack.c.b16 %v458, %v456
      %v561 = vpack.c.b16 %v461, %v459
      %v562 = vpack.c.b16 %v462, %v460
      %v563 = vpack.c.b16 %v465, %v463
      %v564 = vpack.c.b16 %v466, %v464
      %v565 = vpack.c.b16 %v469, %v467
      %v566 = vpack.c.b16 %v470, %v468
      %v567 = vpack.c.b16 %v473, %v471
      %v568 = vpack.c.b16 %v474, %v472
      %v569 = vpack.c.b16 %v477, %v475
      %v570 = vpack.c.b16 %v478, %v476
      %v571 = vpack.c.b16 %v481, %v479
      %v572 = vpack.c.b16 %v482, %v480
      %v573 = vpack.c.b16 %v485, %v483
      %v574 = vpack.c.b16 %v486, %v484
      %v575 = vpack.c.b16 %v489, %v487
      %v576 = vpack.c.b16 %v490, %v488
      %v577 = vpack.c.b16 %v493, %v491
      %v578 = vpack.c.b16 %v494, %v492
      %v579 = vpack.c.b16 %v497, %v495
      %v580 = vpack.c.b16 %v498, %v496
      %v581 = vpack.c.b16 %v501, %v499
      %v582 = vpack.c.b16 %v502, %v500
      %v583 = vpack.c.b16 %v505, %v503
      %v584 = vpack.c.b16 %v506, %v504
      %v585 = vpack.c.b16 %v509, %v507
      %v586 = vpack.c.b16 %v510, %v508
      %v587 = vpack.c.b16 %v513, %v511
      %v588 = vpack.c.b16 %v514, %v512
      %v589 = vpack.c.b16 %v517, %v515
      %v590 = vpack.c.b16 %v518, %v516
      %v591 = vpack.c.b16 %v521, %v519
      %v592 = vpack.c.b16 %v522, %v520
      %v593 = vpack.c.b16 %v525, %v523
      %v594 = vpack.c.b16 %v526, %v524
      %v595 = vpack.c.b16 %v529, %v527
      %v596 = vpack.c.b16 %v530, %v528
      %v597 = vpack.c.b16 %v533, %v531
      %v598 = vpack.c.b16 %v534, %v532
      %663 = vmatprep.subr.bf16.mxu0 %v536
      %664 = vmatpush1.bf16.msra.mxu0 %v535
      %665 = vmatprep.subr.bf16.mxu0 %v538
      %666 = vmatpush1.bf16.msra.mxu0 %v537
      %667 = vmatprep.subr.bf16.mxu0 %v540
      %668 = vmatpush1.bf16.msra.mxu0 %v539
      %669 = vmatprep.subr.bf16.mxu0 %v542
      %670 = vmatpush1.bf16.msra.mxu0 %v541
      %671 = vmatprep.subr.bf16.mxu0 %v544
      %672 = vmatpush1.bf16.msra.mxu0 %v543
      %673 = vmatprep.subr.bf16.mxu0 %v546
      %674 = vmatpush1.bf16.msra.mxu0 %v545
      %675 = vmatprep.subr.bf16.mxu0 %v548
      %676 = vmatpush1.bf16.msra.mxu0 %v547
      %677 = vmatprep.subr.bf16.mxu0 %v550
      %678 = vmatpush1.bf16.msra.mxu0 %v549
      %679 = vmatprep.subr.bf16.mxu0 %v552
      %680 = vmatpush1.bf16.msra.mxu0 %v551
      %681 = vmatprep.subr.bf16.mxu0 %v554
      %682 = vmatpush1.bf16.msra.mxu0 %v553
      %683 = vmatprep.subr.bf16.mxu0 %v556
      %684 = vmatpush1.bf16.msra.mxu0 %v555
      %685 = vmatprep.subr.bf16.mxu0 %v558
      %686 = vmatpush1.bf16.msra.mxu0 %v557
      %687 = vmatprep.subr.bf16.mxu0 %v560
      %688 = vmatpush1.bf16.msra.mxu0 %v559
      %689 = vmatprep.subr.bf16.mxu0 %v562
      %690 = vmatpush1.bf16.msra.mxu0 %v561
      %691 = vmatprep.subr.bf16.mxu0 %v564
      %692 = vmatpush1.bf16.msra.mxu0 %v563
      %693 = vmatprep.subr.bf16.mxu0 %v566
      %694 = vmatpush1.bf16.msra.mxu0 %v565
      %695 = vmatprep.mubr.bf16.mxu0 %v248
      %696 = vmatmul.mubr.bf16.gmra.mrb[0].mxu0 %v247
      %v697 = vpop.f32.mrb[0].mxu0
      %v698 = vadd.f32 0.0, %v697
      %v699 = vpop.f32.mrb[0].mxu0
      %v700 = vadd.f32 0.0, %v699
      %v701 = vpop.f32.mrb[0].mxu0
      %v702 = vadd.f32 0.0, %v701
      %v703 = vpop.f32.mrb[0].mxu0
      %v704 = vadd.f32 0.0, %v703
      %705 = vmatprep.mubr.bf16.mxu0 %v252
      %706 = vmatmul.mubr.bf16.gmra.mrb[0].mxu0 %v251
      %v707 = vpop.f32.mrb[0].mxu0
      %v708 = vadd.f32 0.0, %v707
      %v709 = vpop.f32.mrb[0].mxu0
      %v710 = vadd.f32 0.0, %v709
      %v711 = vpop.f32.mrb[0].mxu0
      %v712 = vadd.f32 0.0, %v711
      %v713 = vpop.f32.mrb[0].mxu0
      %v714 = vadd.f32 0.0, %v713
      %715 = vmatprep.mubr.bf16.mxu0 %v256
      %716 = vmatmul.mubr.bf16.gmra.mrb[0].mxu0 %v255
      %v717 = vpop.f32.mrb[0].mxu0
      %v718 = vadd.f32 0.0, %v717
      %v719 = vpop.f32.mrb[0].mxu0
      %v720 = vadd.f32 0.0, %v719
      %v721 = vpop.f32.mrb[0].mxu0
      %v722 = vadd.f32 0.0, %v721
      %v723 = vpop.f32.mrb[0].mxu0
      %v724 = vadd.f32 0.0, %v723
      %725 = vmatprep.mubr.bf16.mxu0 %v260
      %726 = vmatmul.mubr.bf16.gmra.mrb[0].mxu0 %v259
      %v727 = vpop.f32.mrb[0].mxu0
      %v728 = vadd.f32 0.0, %v727
      %v729 = vpop.f32.mrb[0].mxu0
      %v730 = vadd.f32 0.0, %v729
      %v731 = vpop.f32.mrb[0].mxu0
      %v732 = vadd.f32 0.0, %v731
      %v733 = vpop.f32.mrb[0].mxu0
      %v734 = vadd.f32 0.0, %v733
      %735 = vmatprep.mubr.bf16.mxu0 %v264
      %736 = vmatmul.mubr.bf16.gmra.mrb[0].mxu0 %v263
      %v737 = vpop.f32.mrb[0].mxu0
      %v738 = vadd.f32 0.0, %v737
      %v739 = vpop.f32.mrb[0].mxu0
      %v740 = vadd.f32 0.0, %v739
      %v741 = vpop.f32.mrb[0].mxu0
      %v742 = vadd.f32 0.0, %v741
      %v743 = vpop.f32.mrb[0].mxu0
      %v744 = vadd.f32 0.0, %v743
      %745 = vmatprep.mubr.bf16.mxu0 %v268
      %746 = vmatmul.mubr.bf16.gmra.mrb[0].mxu0 %v267
      %v747 = vpop.f32.mrb[0].mxu0
      %v748 = vadd.f32 0.0, %v747
      %v749 = vpop.f32.mrb[0].mxu0
      %v750 = vadd.f32 0.0, %v749
      %v751 = vpop.f32.mrb[0].mxu0
      %v752 = vadd.f32 0.0, %v751
      %v753 = vpop.f32.mrb[0].mxu0
      %v754 = vadd.f32 0.0, %v753
      %755 = vmatprep.mubr.bf16.mxu0 %v272
      %756 = vmatmul.mubr.bf16.gmra.mrb[0].mxu0 %v271
      %v757 = vpop.f32.mrb[0].mxu0
      %v758 = vadd.f32 0.0, %v757
      %v759 = vpop.f32.mrb[0].mxu0
      %v760 = vadd.f32 0.0, %v759
      %v761 = vpop.f32.mrb[0].mxu0
      %v762 = vadd.f32 0.0, %v761
      %v763 = vpop.f32.mrb[0].mxu0
      %v764 = vadd.f32 0.0, %v763
      %765 = vmatprep.mubr.bf16.mxu0 %v276
      %766 = vmatmul.mubr.bf16.gmra.mrb[0].mxu0 %v275
      %v767 = vpop.f32.mrb[0].mxu0
      %v768 = vadd.f32 0.0, %v767
      %v769 = vpop.f32.mrb[0].mxu0
      %v770 = vadd.f32 0.0, %v769
      %v771 = vpop.f32.mrb[0].mxu0
      %v772 = vadd.f32 0.0, %v771
      %v773 = vpop.f32.mrb[0].mxu0
      %v774 = vadd.f32 0.0, %v773
      %775 = vdwg.mxu0
      %776 = vmatprep.subr.bf16.mxu0 %v568
      %777 = vmatpush1.bf16.msra.mxu0 %v567
      %778 = vmatprep.subr.bf16.mxu0 %v570
      %779 = vmatpush1.bf16.msra.mxu0 %v569
      %780 = vmatprep.subr.bf16.mxu0 %v572
      %781 = vmatpush1.bf16.msra.mxu0 %v571
      %782 = vmatprep.subr.bf16.mxu0 %v574
      %783 = vmatpush1.bf16.msra.mxu0 %v573
      %784 = vmatprep.subr.bf16.mxu0 %v576
      %785 = vmatpush1.bf16.msra.mxu0 %v575
      %786 = vmatprep.subr.bf16.mxu0 %v578
      %787 = vmatpush1.bf16.msra.mxu0 %v577
      %788 = vmatprep.subr.bf16.mxu0 %v580
      %789 = vmatpush1.bf16.msra.mxu0 %v579
      %790 = vmatprep.subr.bf16.mxu0 %v582
      %791 = vmatpush1.bf16.msra.mxu0 %v581
      %792 = vmatprep.subr.bf16.mxu0 %v584
      %793 = vmatpush1.bf16.msra.mxu0 %v583
      %794 = vmatprep.subr.bf16.mxu0 %v586
      %795 = vmatpush1.bf16.msra.mxu0 %v585
      %796 = vmatprep.subr.bf16.mxu0 %v588
      %797 = vmatpush1.bf16.msra.mxu0 %v587
      %798 = vmatprep.subr.bf16.mxu0 %v590
      %799 = vmatpush1.bf16.msra.mxu0 %v589
      %800 = vmatprep.subr.bf16.mxu0 %v592
      %801 = vmatpush1.bf16.msra.mxu0 %v591
      %802 = vmatprep.subr.bf16.mxu0 %v594
      %803 = vmatpush1.bf16.msra.mxu0 %v593
      %804 = vmatprep.subr.bf16.mxu0 %v596
      %805 = vmatpush1.bf16.msra.mxu0 %v595
      %806 = vmatprep.subr.bf16.mxu0 %v598
      %807 = vmatpush1.bf16.msra.mxu0 %v597
      %808 = vmatprep.mubr.bf16.mxu0 %v250
      %809 = vmatmul.mubr.bf16.gmra.mrb[0].mxu0 %v249
      %v810 = vpop.f32.mrb[0].mxu0
      %v811 = vadd.f32 %v698, %v810
      %v812 = vpop.f32.mrb[0].mxu0
      %v813 = vadd.f32 %v700, %v812
      %v814 = vpop.f32.mrb[0].mxu0
      %v815 = vadd.f32 %v702, %v814
      %v816 = vpop.f32.mrb[0].mxu0
      %v817 = vadd.f32 %v704, %v816
      %818 = vmatprep.mubr.bf16.mxu0 %v254
      %819 = vmatmul.mubr.bf16.gmra.mrb[0].mxu0 %v253
      %v820 = vpop.f32.mrb[0].mxu0
      %v821 = vadd.f32 %v708, %v820
      %v822 = vpop.f32.mrb[0].mxu0
      %v823 = vadd.f32 %v710, %v822
      %v824 = vpop.f32.mrb[0].mxu0
      %v825 = vadd.f32 %v712, %v824
      %v826 = vpop.f32.mrb[0].mxu0
      %v827 = vadd.f32 %v714, %v826
      %828 = vmatprep.mubr.bf16.mxu0 %v258
      %829 = vmatmul.mubr.bf16.gmra.mrb[0].mxu0 %v257
      %v830 = vpop.f32.mrb[0].mxu0
      %v831 = vadd.f32 %v718, %v830
      %v832 = vpop.f32.mrb[0].mxu0
      %v833 = vadd.f32 %v720, %v832
      %v834 = vpop.f32.mrb[0].mxu0
      %v835 = vadd.f32 %v722, %v834
      %v836 = vpop.f32.mrb[0].mxu0
      %v837 = vadd.f32 %v724, %v836
      %838 = vmatprep.mubr.bf16.mxu0 %v262
      %839 = vmatmul.mubr.bf16.gmra.mrb[0].mxu0 %v261
      %v840 = vpop.f32.mrb[0].mxu0
      %v841 = vadd.f32 %v728, %v840
      %v842 = vpop.f32.mrb[0].mxu0
      %v843 = vadd.f32 %v730, %v842
      %v844 = vpop.f32.mrb[0].mxu0
      %v845 = vadd.f32 %v732, %v844
      %v846 = vpop.f32.mrb[0].mxu0
      %v847 = vadd.f32 %v734, %v846
      %848 = vmatprep.mubr.bf16.mxu0 %v266
      %849 = vmatmul.mubr.bf16.gmra.mrb[0].mxu0 %v265
      %v850 = vpop.f32.mrb[0].mxu0
      %v851 = vadd.f32 %v738, %v850
      %v852 = vpop.f32.mrb[0].mxu0
      %v853 = vadd.f32 %v740, %v852
      %v854 = vpop.f32.mrb[0].mxu0
      %v855 = vadd.f32 %v742, %v854
      %v856 = vpop.f32.mrb[0].mxu0
      %v857 = vadd.f32 %v744, %v856
      %858 = vmatprep.mubr.bf16.mxu0 %v270
      %859 = vmatmul.mubr.bf16.gmra.mrb[0].mxu0 %v269
      %v860 = vpop.f32.mrb[0].mxu0
      %v861 = vadd.f32 %v748, %v860
      %v862 = vpop.f32.mrb[0].mxu0
      %v863 = vadd.f32 %v750, %v862
      %v864 = vpop.f32.mrb[0].mxu0
      %v865 = vadd.f32 %v752, %v864
      %v866 = vpop.f32.mrb[0].mxu0
      %v867 = vadd.f32 %v754, %v866
      %868 = vmatprep.mubr.bf16.mxu0 %v274
      %869 = vmatmul.mubr.bf16.gmra.mrb[0].mxu0 %v273
      %v870 = vpop.f32.mrb[0].mxu0
      %v871 = vadd.f32 %v758, %v870
      %v872 = vpop.f32.mrb[0].mxu0
      %v873 = vadd.f32 %v760, %v872
      %v874 = vpop.f32.mrb[0].mxu0
      %v875 = vadd.f32 %v762, %v874
      %v876 = vpop.f32.mrb[0].mxu0
      %v877 = vadd.f32 %v764, %v876
      %878 = vmatprep.mubr.bf16.mxu0 %v278
      %879 = vmatmul.mubr.bf16.gmra.mrb[0].mxu0 %v277
      %v880 = vpop.f32.mrb[0].mxu0
      %v881 = vadd.f32 %v768, %v880
      %v882 = vpop.f32.mrb[0].mxu0
      %v883 = vadd.f32 %v770, %v882
      %v884 = vpop.f32.mrb[0].mxu0
      %v885 = vadd.f32 %v772, %v884
      %v886 = vpop.f32.mrb[0].mxu0
      %v887 = vadd.f32 %v774, %v886
      %888 = vdwg.mxu0
      %v889 = vmul.f32 %v811, %v811
      %v890 = vmul.f32 %v815, %v815
      %v891 = vmul.f32 %v821, %v821
      %v892 = vmul.f32 %v825, %v825
      %v893 = vmul.f32 %v831, %v831
      %v894 = vmul.f32 %v835, %v835
      %v895 = vmul.f32 %v841, %v841
      %v896 = vmul.f32 %v845, %v845
      %v897 = vmul.f32 %v851, %v851
      %v898 = vmul.f32 %v855, %v855
      %v899 = vmul.f32 %v861, %v861
      %v900 = vmul.f32 %v865, %v865
      %v901 = vmul.f32 %v871, %v871
      %v902 = vmul.f32 %v875, %v875
      %v903 = vmul.f32 %v881, %v881
      %v904 = vmul.f32 %v885, %v885
      %v905 = vmul.f32 %v813, %v813
      %v906 = vmul.f32 %v817, %v817
      %v907 = vmul.f32 %v823, %v823
      %v908 = vmul.f32 %v827, %v827
      %v909 = vmul.f32 %v833, %v833
      %v910 = vmul.f32 %v837, %v837
      %v911 = vmul.f32 %v843, %v843
      %v912 = vmul.f32 %v847, %v847
      %v913 = vmul.f32 %v853, %v853
      %v914 = vmul.f32 %v857, %v857
      %v915 = vmul.f32 %v863, %v863
      %v916 = vmul.f32 %v867, %v867
      %v917 = vmul.f32 %v873, %v873
      %v918 = vmul.f32 %v877, %v877
      %v919 = vmul.f32 %v883, %v883
      %v920 = vmul.f32 %v887, %v887
      %v921 = vadd.f32 %v889, %v905
      %v922 = vadd.f32 %v890, %v906
      %v923 = vadd.f32 %v891, %v907
      %v924 = vadd.f32 %v892, %v908
      %v925 = vadd.f32 %v893, %v909
      %v926 = vadd.f32 %v894, %v910
      %v927 = vadd.f32 %v895, %v911
      %v928 = vadd.f32 %v896, %v912
      %v929 = vadd.f32 %v897, %v913
      %v930 = vadd.f32 %v898, %v914
      %v931 = vadd.f32 %v899, %v915
      %v932 = vadd.f32 %v900, %v916
      %v933 = vadd.f32 %v901, %v917
      %v934 = vadd.f32 %v902, %v918
      %v935 = vadd.f32 %v903, %v919
      %v936 = vadd.f32 %v904, %v920
      %v937 = vrsqrt.pop %v921
      %v938 = vmul.f32 %v921, %v937
      %vm939 = vcmp.eq.f32.partialorder %v921, inf
      %v940 = vsel %vm939, %v921, %v938
      %vm941 = vcmp.eq.f32.partialorder %v921, 0.0
      %v942 = vand.u32 %v921, 2147483648
      %v943 = vsel %vm941, %v942, %v940
      %v944 = vrsqrt.pop %v922
      %v945 = vmul.f32 %v922, %v944
      %vm946 = vcmp.eq.f32.partialorder %v922, inf
      %v947 = vsel %vm946, %v922, %v945
      %vm948 = vcmp.eq.f32.partialorder %v922, 0.0
      %v949 = vand.u32 %v922, 2147483648
      %v950 = vsel %vm948, %v949, %v947
      %v951 = vrsqrt.pop %v923
      %v952 = vmul.f32 %v923, %v951
      %vm953 = vcmp.eq.f32.partialorder %v923, inf
      %v954 = vsel %vm953, %v923, %v952
      %vm955 = vcmp.eq.f32.partialorder %v923, 0.0
      %v956 = vand.u32 %v923, 2147483648
      %v957 = vsel %vm955, %v956, %v954
      %v958 = vrsqrt.pop %v924
      %v959 = vmul.f32 %v924, %v958
      %vm960 = vcmp.eq.f32.partialorder %v924, inf
      %v961 = vsel %vm960, %v924, %v959
      %vm962 = vcmp.eq.f32.partialorder %v924, 0.0
      %v963 = vand.u32 %v924, 2147483648
      %v964 = vsel %vm962, %v963, %v961
      %v965 = vrsqrt.pop %v925
      %v966 = vmul.f32 %v925, %v965
      %vm967 = vcmp.eq.f32.partialorder %v925, inf
      %v968 = vsel %vm967, %v925, %v966
      %vm969 = vcmp.eq.f32.partialorder %v925, 0.0
      %v970 = vand.u32 %v925, 2147483648
      %v971 = vsel %vm969, %v970, %v968
      %v972 = vrsqrt.pop %v926
      %v973 = vmul.f32 %v926, %v972
      %vm974 = vcmp.eq.f32.partialorder %v926, inf
      %v975 = vsel %vm974, %v926, %v973
      %vm976 = vcmp.eq.f32.partialorder %v926, 0.0
      %v977 = vand.u32 %v926, 2147483648
      %v978 = vsel %vm976, %v977, %v975
      %v979 = vrsqrt.pop %v927
      %v980 = vmul.f32 %v927, %v979
      %vm981 = vcmp.eq.f32.partialorder %v927, inf
      %v982 = vsel %vm981, %v927, %v980
      %vm983 = vcmp.eq.f32.partialorder %v927, 0.0
      %v984 = vand.u32 %v927, 2147483648
      %v985 = vsel %vm983, %v984, %v982
      %v986 = vrsqrt.pop %v928
      %v987 = vmul.f32 %v928, %v986
      %vm988 = vcmp.eq.f32.partialorder %v928, inf
      %v989 = vsel %vm988, %v928, %v987
      %vm990 = vcmp.eq.f32.partialorder %v928, 0.0
      %v991 = vand.u32 %v928, 2147483648
      %v992 = vsel %vm990, %v991, %v989
      %v993 = vrsqrt.pop %v929
      %v994 = vmul.f32 %v929, %v993
      %vm995 = vcmp.eq.f32.partialorder %v929, inf
      %v996 = vsel %vm995, %v929, %v994
      %vm997 = vcmp.eq.f32.partialorder %v929, 0.0
      %v998 = vand.u32 %v929, 2147483648
      %v999 = vsel %vm997, %v998, %v996
      %v1000 = vrsqrt.pop %v930
      %v1001 = vmul.f32 %v930, %v1000
      %vm1002 = vcmp.eq.f32.partialorder %v930, inf
      %v1003 = vsel %vm1002, %v930, %v1001
      %vm1004 = vcmp.eq.f32.partialorder %v930, 0.0
      %v1005 = vand.u32 %v930, 2147483648
      %v1006 = vsel %vm1004, %v1005, %v1003
      %v1007 = vrsqrt.pop %v931
      %v1008 = vmul.f32 %v931, %v1007
      %vm1009 = vcmp.eq.f32.partialorder %v931, inf
      %v1010 = vsel %vm1009, %v931, %v1008
      %vm1011 = vcmp.eq.f32.partialorder %v931, 0.0
      %v1012 = vand.u32 %v931, 2147483648
      %v1013 = vsel %vm1011, %v1012, %v1010
      %v1014 = vrsqrt.pop %v932
      %v1015 = vmul.f32 %v932, %v1014
      %vm1016 = vcmp.eq.f32.partialorder %v932, inf
      %v1017 = vsel %vm1016, %v932, %v1015
      %vm1018 = vcmp.eq.f32.partialorder %v932, 0.0
      %v1019 = vand.u32 %v932, 2147483648
      %v1020 = vsel %vm1018, %v1019, %v1017
      %v1021 = vrsqrt.pop %v933
      %v1022 = vmul.f32 %v933, %v1021
      %vm1023 = vcmp.eq.f32.partialorder %v933, inf
      %v1024 = vsel %vm1023, %v933, %v1022
      %vm1025 = vcmp.eq.f32.partialorder %v933, 0.0
      %v1026 = vand.u32 %v933, 2147483648
      %v1027 = vsel %vm1025, %v1026, %v1024
      %v1028 = vrsqrt.pop %v934
      %v1029 = vmul.f32 %v934, %v1028
      %vm1030 = vcmp.eq.f32.partialorder %v934, inf
      %v1031 = vsel %vm1030, %v934, %v1029
      %vm1032 = vcmp.eq.f32.partialorder %v934, 0.0
      %v1033 = vand.u32 %v934, 2147483648
      %v1034 = vsel %vm1032, %v1033, %v1031
      %v1035 = vrsqrt.pop %v935
      %v1036 = vmul.f32 %v935, %v1035
      %vm1037 = vcmp.eq.f32.partialorder %v935, inf
      %v1038 = vsel %vm1037, %v935, %v1036
      %vm1039 = vcmp.eq.f32.partialorder %v935, 0.0
      %v1040 = vand.u32 %v935, 2147483648
      %v1041 = vsel %vm1039, %v1040, %v1038
      %v1042 = vrsqrt.pop %v936
      %v1043 = vmul.f32 %v936, %v1042
      %vm1044 = vcmp.eq.f32.partialorder %v936, inf
      %v1045 = vsel %vm1044, %v936, %v1043
      %vm1046 = vcmp.eq.f32.partialorder %v936, 0.0
      %v1047 = vand.u32 %v936, 2147483648
      %v1048 = vsel %vm1046, %v1047, %v1045
      %1049 = vxpose.xlu0.b32.start [1/16] %v943, 128
      %1050 = vxpose.xlu0.b32.cont [2/16] %v950, 128
      %1051 = vxpose.xlu0.b32.cont [3/16] %v957, 128
      %1052 = vxpose.xlu0.b32.cont [4/16] %v964, 128
      %1053 = vxpose.xlu0.b32.cont [5/16] %v971, 128
      %1054 = vxpose.xlu0.b32.cont [6/16] %v978, 128
      %1055 = vxpose.xlu0.b32.cont [7/16] %v985, 128
      %1056 = vxpose.xlu0.b32.cont [8/16] %v992, 128
      %1057 = vxpose.xlu0.b32.cont [9/16] %v999, 128
      %1058 = vxpose.xlu0.b32.cont [10/16] %v1006, 128
      %1059 = vxpose.xlu0.b32.cont [11/16] %v1013, 128
      %1060 = vxpose.xlu0.b32.cont [12/16] %v1020, 128
      %1061 = vxpose.xlu0.b32.cont [13/16] %v1027, 128
      %1062 = vxpose.xlu0.b32.cont [14/16] %v1034, 128
      %1063 = vxpose.xlu0.b32.cont [15/16] %v1041, 128
      %1064 = vxpose.xlu0.b32.end [16/16] %v1048, 128
      %v1065 = vpop.trf.xlu0
      %v1066 = vpop.trf.xlu0
      %v1067 = vpop.trf.xlu0
      %v1068 = vpop.trf.xlu0
      %v1069 = vpop.trf.xlu0
      %v1070 = vpop.trf.xlu0
      %v1071 = vpop.trf.xlu0
      %v1072 = vpop.trf.xlu0
      %v1073 = vpop.trf.xlu0
      %v1074 = vpop.trf.xlu0
      %v1075 = vpop.trf.xlu0
      %v1076 = vpop.trf.xlu0
      %v1077 = vpop.trf.xlu0
      %v1078 = vpop.trf.xlu0
      %v1079 = vpop.trf.xlu0
      %v1080 = vpop.trf.xlu0
      %vm1081 = vcmask 64512
      %1082 = vst.msk [vmem:[%s163] sm:$0xff] %vm1081, %v1065
      %1083 = vst.msk [vmem:[%s163 + $0x8] sm:$0xff] %vm1081, %v1066
      %1084 = vst.msk [vmem:[%s163 + $0x10] sm:$0xff] %vm1081, %v1067
      %1085 = vst.msk [vmem:[%s163 + $0x18] sm:$0xff] %vm1081, %v1068
      %1086 = vst.msk [vmem:[%s163 + $0x20] sm:$0xff] %vm1081, %v1069
      %1087 = vst.msk [vmem:[%s163 + $0x28] sm:$0xff] %vm1081, %v1070
      %1088 = vst.msk [vmem:[%s163 + $0x30] sm:$0xff] %vm1081, %v1071
      %1089 = vst.msk [vmem:[%s163 + $0x38] sm:$0xff] %vm1081, %v1072
      %1090 = vst.msk [vmem:[%s163 + $0x40] sm:$0xff] %vm1081, %v1073
      %1091 = vst.msk [vmem:[%s163 + $0x48] sm:$0xff] %vm1081, %v1074
      %1092 = vst.msk [vmem:[%s163 + $0x50] sm:$0xff] %vm1081, %v1075
      %1093 = vst.msk [vmem:[%s163 + $0x58] sm:$0xff] %vm1081, %v1076
      %1094 = vst.msk [vmem:[%s163 + $0x60] sm:$0xff] %vm1081, %v1077
      %1095 = vst.msk [vmem:[%s163 + $0x68] sm:$0xff] %vm1081, %v1078
      %1096 = vst.msk [vmem:[%s163 + $0x70] sm:$0xff] %vm1081, %v1079
      %1097 = vst.msk [vmem:[%s163 + $0x78] sm:$0xff] %vm1081, %v1080
      %p1098 = scmp.lt.s32.totalorder %s17, 1
      %s1099 = scalar_select %p1098, %s17, 1
      %p1100 = scmp.lt.s32.totalorder %s18, 0
      %s1101 = scalar_select %p1100, %s18, 0
      %s1102 = smul.addr %s1099, 16
      %s1103 = sadd.s32 %s1101, %s1102
      %s1104 = smul.addr %s1103, 8
      %s1105 = scalar_lea.vmem %s2, %s1104
      // Predicated region
      $region33: #{_forward_impl.1} parent=27 // pred_check
        %p1106 = pneg %p92
      $region34: #{_forward_impl.1} parent=27 // pred_check_branch
        %1108 = sbr.rel (%p1106) target = $region36
      $region35: #{_forward_impl.1} parent=27 // pred_region
        _
      $region36: #{_forward_impl.1} parent=27 // pred_fallthru
        _
    $region28: #{_forward_impl.1} parent=5 // pred_fallthru
      _
    %p1109 = scmp.le.s32.totalorder 2, %s8
    // Predicated region
    $region37: #{_forward_impl.1} parent=5 // pred_check
      %p1110 = pneg %p1109
    $region38: #{_forward_impl.1} parent=5 // pred_check_branch
      %1112 = sbr.rel (%p1110) target = $region40
    $region39: #{_forward_impl.1} parent=5 // pred_region
      %s1113 = ssub.s32 %s8, 2
      // Predicated region
      $region41: #{_forward_impl.1} parent=39 // pred_check
        %p1114 = pneg %p98
      $region42: #{_forward_impl.1} parent=39 // pred_check_branch
        %1116 = sbr.rel (%p1114) target = $region44
      $region43: #{_forward_impl.1} parent=39 // pred_region
        %p1117 = scmp.lt.s32.totalorder %s19, 1
        %s1118 = scalar_select %p1117, %s19, 1
        %p1119 = scmp.lt.s32.totalorder %s20, 0
        %s1120 = scalar_select %p1119, %s20, 0
        %s1121 = smul.addr %s1118, 16
        %s1122 = sadd.s32 %s1120, %s1121
        %s1123 = smul.addr %s1122, 8
        %s1124 = scalar_lea.vmem %s2, %s1123
      $region44: #{_forward_impl.1} parent=39 // pred_fallthru
        _
    $region40: #{_forward_impl.1} parent=5 // pred_fallthru
      _
  $region6: #{_forward_impl.1} parent=0 // loop_footer
    %s12 = sadd.s32 1, %s8
  $region7: #{_forward_impl.1} parent=0 // loop_footer_branch
    %7 = sbr.rel target = $region3
  $region8: #{_forward_impl.1} parent=0 // loop_exit
    _

</llo_original>
